<compile_context>
chip_gen: v6e
topology: v6e:2x2x1
jax: 0.10.0
libtpu: 0.0.40
codegen_flags: <defaults>
</compile_context>

<pallas_src>
import jax
import jax.numpy as jnp
from jax.experimental import pallas as pl
from jax.experimental.pallas import tpu as pltpu


def mlp_kernel(xT_ref, w1T_ref, b1T_ref, w2T_ref, b2T_ref, w3T_ref, b3T_ref,
               oT_ref):
    xT = xT_ref[...]                    # [d_in, TILE_B] f32, batch on lanes
    w1T = w1T_ref[...]                  # [H1, d_in]     f32

    # ---- Layer 1 (K = d_in = 2): VPU FMAs; x^T rows sublane-broadcast -------
    h1T = b1T_ref[...]                  # [H1, 1] -> broadcast along lanes once
    for k in range(xT_ref.shape[0]):    # static unroll, d_in is tiny
        h1T = h1T + w1T[:, k:k + 1] * xT[k:k + 1, :]
    h1T = jnp.maximum(h1T, 0.0)         # [H1, TILE_B] f32

    # ---- Layer 2: MXU, bf16 operands, f32 accumulate; N = TILE_B lanes ------
    h2T = jnp.dot(w2T_ref[...], h1T.astype(jnp.bfloat16),
                  preferred_element_type=jnp.float32)
    h2T = jnp.maximum(h2T + b2T_ref[...], 0.0)          # [H2, TILE_B] f32

    # ---- Layer 3: logits^T (raw class scores, no activation) ----------------
    outT = jnp.dot(w3T_ref[...], h2T.astype(jnp.bfloat16),
                   preferred_element_type=jnp.float32)
    oT_ref[...] = (outT + b3T_ref[...]).astype(oT_ref.dtype)   # [out, TILE_B]


def _round_up(n, m):
    return ((n + m - 1) // m) * m


def mlp_forward(x, params, *, tile_b=None):
    """Fused MLP forward pass.

    x:       [B, input_dim] float32
    params:  dict of w1,b1,w2,b2,w3,b3 (weights [in, out], biases [1, out])
    returns: [B, output_dim] float32 class scores
    """
    w1, b1 = params["w1"], params["b1"]
    w2, b2 = params["w2"], params["b2"]
    w3, b3 = params["w3"], params["b3"]
    B, d_in = x.shape
    out_dim = w3.shape[1]

    # Pre-transpose the tiny weights once; bf16 operands for the MXU layers.
    w1T = w1.T                                    # [H1, d_in] f32
    b1T = b1.reshape(-1, 1)                       # [H1, 1]    f32
    w2T = w2.T.astype(jnp.bfloat16)               # [H2, H1]   bf16
    b2T = b2.reshape(-1, 1)                       # [H2, 1]    f32
    w3T = w3.T.astype(jnp.bfloat16)               # [out, H2]  bf16
    b3T = b3.reshape(-1, 1)                       # [out, 1]   f32

    # Batch lives on the lane axis -> tile_b must be a multiple of 128.
    # Default: big tiles to amortize per-step overhead, capped at 16K rows
    # (few MiB of VMEM incl. double-buffering, safe on v5e/v6e/v7x), and sized
    # so the grid stays >= 2 when B allows it (v7x megacore sharding).
    if tile_b is None:
        tile_b = min(16384, _round_up(pl.cdiv(B, 2), 128))
    tile_b = max(128, _round_up(tile_b, 128))
    b_pad = _round_up(max(B, tile_b), tile_b)
    grid = (b_pad // tile_b,)

    # One cheap pad + transpose outside the kernel: lane-dense (d_in, b_pad).
    xT = jnp.pad(x, ((0, b_pad - B), (0, 0))).T

    def tiled(rows):           # batch-tiled operand (x^T / out^T)
        return pl.BlockSpec((rows, tile_b), lambda i: (0, i))

    def resident(shape):       # VMEM-resident operand (weights / biases)
        return pl.BlockSpec(shape, lambda i: (0, 0))

    outT = pl.pallas_call(
        mlp_kernel,
        out_shape=jax.ShapeDtypeStruct((out_dim, b_pad), jnp.float32),
        grid=grid,
        in_specs=[
            tiled(d_in),
            resident(w1T.shape), resident(b1T.shape),
            resident(w2T.shape), resident(b2T.shape),
            resident(w3T.shape), resident(b3T.shape),
        ],
        out_specs=tiled(out_dim),
        compiler_params=pltpu.CompilerParams(
            dimension_semantics=("parallel",)),
    )(xT, w1T, b1T, w2T, b2T, w3T, b3T)

    # Zero-padded batch rows only produce bias-driven junk; slice them off.
    return outT.T[:B]


def init_params(key, input_dim=2, hidden_dims=(64, 32), output_dim=2):
    """Deterministic init mimicking nn.Linear's uniform(-1/sqrt(fan_in), +...)."""
    dims = [input_dim, hidden_dims[0], hidden_dims[1], output_dim]
    params = {}
    keys = jax.random.split(key, 6)
    for i in range(3):
        fan_in, fan_out = dims[i], dims[i + 1]
        bound = 1.0 / jnp.sqrt(fan_in)
        params[f"w{i+1}"] = jax.random.uniform(
            keys[2 * i], (fan_in, fan_out), jnp.float32, -bound, bound)
        params[f"b{i+1}"] = jax.random.uniform(
            keys[2 * i + 1], (1, fan_out), jnp.float32, -bound, bound)
    return params


if __name__ == "__main__":
    key = jax.random.PRNGKey(0)
    k_x, k_p = jax.random.split(key)

    B, INPUT_DIM = 256, 2
    x = jax.random.normal(k_x, (B, INPUT_DIM), dtype=jnp.float32)
    params = init_params(k_p, input_dim=INPUT_DIM,
                         hidden_dims=(64, 32), output_dim=2)

    # Default tile_b -> 128 here, so grid=(2,) and the batch pipeline / both
    # v7x TensorCores are actually exercised.
    out = mlp_forward(x, params)
    out = jax.block_until_ready(out)
    assert out.shape == (B, 2)

    # Reference with matching numerics (f32 layer 1, bf16-operand MXU layers).
    w2b = params["w2"].astype(jnp.bfloat16)
    w3b = params["w3"].astype(jnp.bfloat16)
    h1 = jnp.maximum(x @ params["w1"] + params["b1"], 0.0)
    h2 = jnp.maximum(
        jnp.dot(h1.astype(jnp.bfloat16), w2b,
                preferred_element_type=jnp.float32) + params["b2"], 0.0)
    ref = jnp.dot(h2.astype(jnp.bfloat16), w3b,
                  preferred_element_type=jnp.float32) + params["b3"]
    assert jnp.allclose(out, ref, atol=1e-2, rtol=1e-2)

    # Loose check against a pure-f32 reference (bf16 MXU rounding only).
    h1f = jnp.maximum(x @ params["w1"] + params["b1"], 0.0)
    h2f = jnp.maximum(h1f @ params["w2"] + params["b2"], 0.0)
    ref_f32 = h2f @ params["w3"] + params["b3"]
    assert jnp.allclose(out, ref_f32, atol=5e-2, rtol=5e-2)

    print("KERNEL_OK")
</pallas_src>

<mosaic_0001>
module attributes {stable_mosaic.version = 11 : i64} {
  func.func @mlp_kernel(%arg0: i32, %arg1: memref<2x128xf32, #tpu.memory_space<vmem>>, %arg2: memref<64x2xf32, #tpu.memory_space<vmem>>, %arg3: memref<64x1xf32, #tpu.memory_space<vmem>>, %arg4: memref<32x64xbf16, #tpu.memory_space<vmem>>, %arg5: memref<32x1xf32, #tpu.memory_space<vmem>>, %arg6: memref<2x32xbf16, #tpu.memory_space<vmem>>, %arg7: memref<2x1xf32, #tpu.memory_space<vmem>>, %arg8: memref<2x128xf32, #tpu.memory_space<vmem>>) attributes {dimension_semantics = [#tpu.dimension_semantics<parallel>], iteration_bounds = array<i64: 2>, scalar_prefetch = 0 : i64, scratch_operands = 0 : i64, tpu.core_type = #tpu.core_type<tc>, window_params = [{transform_indices = @transform_0, window_bounds = array<i64: 2, 128>}, {pipeline_mode = #tpu.pipeline_mode<synchronous>, transform_indices = @transform_1, window_bounds = array<i64: 64, 2>}, {pipeline_mode = #tpu.pipeline_mode<synchronous>, transform_indices = @transform_2, window_bounds = array<i64: 64, 1>}, {pipeline_mode = #tpu.pipeline_mode<synchronous>, transform_indices = @transform_3, window_bounds = array<i64: 32, 64>}, {pipeline_mode = #tpu.pipeline_mode<synchronous>, transform_indices = @transform_4, window_bounds = array<i64: 32, 1>}, {pipeline_mode = #tpu.pipeline_mode<synchronous>, transform_indices = @transform_5, window_bounds = array<i64: 2, 32>}, {pipeline_mode = #tpu.pipeline_mode<synchronous>, transform_indices = @transform_6, window_bounds = array<i64: 2, 1>}, {transform_indices = @transform_7, window_bounds = array<i64: 2, 128>}]} {
    %c0 = arith.constant 0 : index
    %c0_0 = arith.constant 0 : index
    %0 = vector.load %arg1[%c0, %c0_0] : memref<2x128xf32, #tpu.memory_space<vmem>>, vector<2x128xf32>
    %c0_1 = arith.constant 0 : index
    %c0_2 = arith.constant 0 : index
    %1 = vector.load %arg2[%c0_1, %c0_2] : memref<64x2xf32, #tpu.memory_space<vmem>>, vector<64x2xf32>
    %c0_3 = arith.constant 0 : index
    %c0_4 = arith.constant 0 : index
    %2 = vector.load %arg3[%c0_3, %c0_4] : memref<64x1xf32, #tpu.memory_space<vmem>>, vector<64x1xf32>
    %3 = vector.extract_strided_slice %1 {offsets = [0, 0], sizes = [64, 1], strides = [1, 1]} : vector<64x2xf32> to vector<64x1xf32>
    %4 = vector.extract_strided_slice %0 {offsets = [0, 0], sizes = [1, 128], strides = [1, 1]} : vector<2x128xf32> to vector<1x128xf32>
    %5 = vector.broadcast %3 : vector<64x1xf32> to vector<64x128xf32>
    %6 = vector.broadcast %4 : vector<1x128xf32> to vector<64x128xf32>
    %7 = arith.mulf %5, %6 : vector<64x128xf32>
    %8 = vector.broadcast %2 : vector<64x1xf32> to vector<64x128xf32>
    %9 = arith.addf %8, %7 : vector<64x128xf32>
    %10 = vector.extract_strided_slice %1 {offsets = [0, 1], sizes = [64, 1], strides = [1, 1]} : vector<64x2xf32> to vector<64x1xf32>
    %11 = vector.extract_strided_slice %0 {offsets = [1, 0], sizes = [1, 128], strides = [1, 1]} : vector<2x128xf32> to vector<1x128xf32>
    %12 = vector.broadcast %10 : vector<64x1xf32> to vector<64x128xf32>
    %13 = vector.broadcast %11 : vector<1x128xf32> to vector<64x128xf32>
    %14 = arith.mulf %12, %13 : vector<64x128xf32>
    %15 = arith.addf %9, %14 : vector<64x128xf32>
    %cst = arith.constant 0.000000e+00 : f32
    %16 = vector.broadcast %cst : f32 to vector<64x128xf32>
    %17 = arith.maximumf %15, %16 : vector<64x128xf32>
    %c0_5 = arith.constant 0 : index
    %c0_6 = arith.constant 0 : index
    %18 = vector.load %arg4[%c0_5, %c0_6] : memref<32x64xbf16, #tpu.memory_space<vmem>>, vector<32x64xbf16>
    %19 = arith.truncf %17 : vector<64x128xf32> to vector<64x128xbf16>
    %cst_7 = arith.constant dense<0.000000e+00> : vector<32x128xf32>
    %20 = tpu.matmul %18, %19, %cst_7 {dimension_numbers = #tpu.dot_dimension_numbers<[1], [0], [0], [1], [0, 0, 1, 1], [], []>} : vector<32x64xbf16>, vector<64x128xbf16>, vector<32x128xf32> -> vector<32x128xf32>
    %c0_8 = arith.constant 0 : index
    %c0_9 = arith.constant 0 : index
    %21 = vector.load %arg5[%c0_8, %c0_9] : memref<32x1xf32, #tpu.memory_space<vmem>>, vector<32x1xf32>
    %22 = vector.broadcast %21 : vector<32x1xf32> to vector<32x128xf32>
    %23 = arith.addf %20, %22 : vector<32x128xf32>
    %cst_10 = arith.constant 0.000000e+00 : f32
    %24 = vector.broadcast %cst_10 : f32 to vector<32x128xf32>
    %25 = arith.maximumf %23, %24 : vector<32x128xf32>
    %c0_11 = arith.constant 0 : index
    %c0_12 = arith.constant 0 : index
    %26 = vector.load %arg6[%c0_11, %c0_12] : memref<2x32xbf16, #tpu.memory_space<vmem>>, vector<2x32xbf16>
    %27 = arith.truncf %25 : vector<32x128xf32> to vector<32x128xbf16>
    %cst_13 = arith.constant dense<0.000000e+00> : vector<2x128xf32>
    %28 = tpu.matmul %26, %27, %cst_13 {dimension_numbers = #tpu.dot_dimension_numbers<[1], [0], [0], [1], [0, 0, 1, 1], [], []>} : vector<2x32xbf16>, vector<32x128xbf16>, vector<2x128xf32> -> vector<2x128xf32>
    %c0_14 = arith.constant 0 : index
    %c0_15 = arith.constant 0 : index
    %29 = vector.load %arg7[%c0_14, %c0_15] : memref<2x1xf32, #tpu.memory_space<vmem>>, vector<2x1xf32>
    %30 = vector.broadcast %29 : vector<2x1xf32> to vector<2x128xf32>
    %31 = arith.addf %28, %30 : vector<2x128xf32>
    %c0_16 = arith.constant 0 : index
    %c0_17 = arith.constant 0 : index
    %32 = vector.load %arg8[%c0_16, %c0_17] : memref<2x128xf32, #tpu.memory_space<vmem>>, vector<2x128xf32>
    tpu.vector_store %arg8[%c0_16, %c0_17], %31 {strides = array<i32>} : memref<2x128xf32, #tpu.memory_space<vmem>>, vector<2x128xf32>,
    return
  }
  func.func @transform_0(%arg0: i32) -> (i32, i32) {
    %c0_i32 = arith.constant 0 : i32
    %c0_i32_0 = arith.constant 0 : i32
    return %c0_i32, %arg0 : i32, i32
  }
  func.func @transform_1(%arg0: i32) -> (i32, i32) {
    %c0_i32 = arith.constant 0 : i32
    %c0_i32_0 = arith.constant 0 : i32
    %c0_i32_1 = arith.constant 0 : i32
    return %c0_i32, %c0_i32_0 : i32, i32
  }
  func.func @transform_2(%arg0: i32) -> (i32, i32) {
    %c0_i32 = arith.constant 0 : i32
    %c0_i32_0 = arith.constant 0 : i32
    %c0_i32_1 = arith.constant 0 : i32
    return %c0_i32, %c0_i32_0 : i32, i32
  }
  func.func @transform_3(%arg0: i32) -> (i32, i32) {
    %c0_i32 = arith.constant 0 : i32
    %c0_i32_0 = arith.constant 0 : i32
    %c0_i32_1 = arith.constant 0 : i32
    return %c0_i32, %c0_i32_0 : i32, i32
  }
  func.func @transform_4(%arg0: i32) -> (i32, i32) {
    %c0_i32 = arith.constant 0 : i32
    %c0_i32_0 = arith.constant 0 : i32
    %c0_i32_1 = arith.constant 0 : i32
    return %c0_i32, %c0_i32_0 : i32, i32
  }
  func.func @transform_5(%arg0: i32) -> (i32, i32) {
    %c0_i32 = arith.constant 0 : i32
    %c0_i32_0 = arith.constant 0 : i32
    %c0_i32_1 = arith.constant 0 : i32
    return %c0_i32, %c0_i32_0 : i32, i32
  }
  func.func @transform_6(%arg0: i32) -> (i32, i32) {
    %c0_i32 = arith.constant 0 : i32
    %c0_i32_0 = arith.constant 0 : i32
    %c0_i32_1 = arith.constant 0 : i32
    return %c0_i32, %c0_i32_0 : i32, i32
  }
  func.func @transform_7(%arg0: i32) -> (i32, i32) {
    %c0_i32 = arith.constant 0 : i32
    %c0_i32_0 = arith.constant 0 : i32
    return %c0_i32, %arg0 : i32, i32
  }
}

</mosaic_0001>

<llo_original>
// kernel: tpu_custom_call.1
$region0: #{tpu_custom_call.1}
  #allocation0 [shape = 'u32[]', space=smem, size = 0x4, offset = 0x4, fixed_abs, tag = 'smem constant byte address 0x4 - core index']
  #allocation1 [shape = 'u32[144,128]{1,0:T(1,128)}', space=vmem, size = 0x12000, scoped, tag = 'internal scratch']
  %s0 = inlined_call_operand.vmem [shape: f32[2,256], index: 0, kind: input, shape index: {}]
  %s1 = inlined_call_operand.vmem [shape: f32[64,2], index: 1, kind: input, shape index: {}]
  %s2 = inlined_call_operand.vmem [shape: f32[64,1], index: 2, kind: input, shape index: {}]
  %s3 = inlined_call_operand.vmem [shape: bf16[32,64], index: 3, kind: input, shape index: {}]
  %s4 = inlined_call_operand.vmem [shape: f32[32,1], index: 4, kind: input, shape index: {}]
  %s5 = inlined_call_operand.vmem [shape: bf16[2,32], index: 5, kind: input, shape index: {}]
  %s6 = inlined_call_operand.vmem [shape: f32[2,1], index: 6, kind: input, shape index: {}]
  %s7 = inlined_call_operand.hbm [shape: f32[2,256], index: 7, kind: output, shape index: {}]
  %s8 = sld [smem:[#allocation0]]
  $region61: #{tpu_custom_call.1} parent=0
    _
  %s10 = ssub.s32 1, %s8
  %s11 = scalar_select 0, %s10, %s8
  $region1: #{tpu_custom_call.1} parent=0
    #allocation2 [shape = 'u8[2048]{0}', space=vmem, size = 0x800, scoped, tag = 'output window, operand 0']
    #allocation3 [shape = 's32[2]{0}', space=sflag, size = 0x8, scoped, tag = 'scoped memory for tpu_custom_call.1']
    %12 = vsyncpa [#allocation3], 0
    %s13 = scalar_lea.sflag [#allocation3], 1
    %14 = vsyncpa %s13, 0
    loop: start=0, step=1, limit=4
    $region2: #{tpu_custom_call.1} parent=1 // loop_pre_header
      _
    $region3: #{tpu_custom_call.1} parent=1 // loop_header
      %s16 = sphi 0, %s20
      %p17 = scmp.ge.s32.totalorder %s16, 4
      %s26 = sphi 0, %s28
      %s29 = sphi 0, %s26
      %s30 = sphi 0, %s29
      %s46 = sphi 0, %s30
      %s50 = sphi 0, %s50
      %s52 = sphi 0, %s50
      %s53 = sphi 0, %s52
      %s67 = sphi 0, %s53
      %s71 = sphi 0, %s71
      %s73 = sphi 0, %s71
      %s74 = sphi 0, %s73
      %s88 = sphi 0, %s74
      %s92 = sphi 0, %s92
      %s94 = sphi 0, %s92
      %s95 = sphi 0, %s94
      %s109 = sphi 0, %s95
      %s113 = sphi 0, %s113
      %s115 = sphi 0, %s113
      %s116 = sphi 0, %s115
      %s130 = sphi 0, %s116
      %s134 = sphi 0, %s134
      %s136 = sphi 0, %s134
      %s137 = sphi 0, %s136
      %s151 = sphi 0, %s137
      %s155 = sphi 0, %s155
      %s157 = sphi 0, %s155
      %s158 = sphi 0, %s157
      %s172 = sphi 0, %s158
      %s178 = sphi 0, %s180
      %s181 = sphi 0, %s178
      %s182 = sphi 0, %s181
      %s198 = sphi 0, %s182
    $region4: #{tpu_custom_call.1} parent=1 // loop_header_branch
      %19 = sbr.rel (%p17) target = $region8
    $region5: #{tpu_custom_call.1} parent=1 // loop_body
      %s21 = ssub.s32 %s16, 1
      %s22 = ssub.s32 %s16, 2
      %s23 = sadd.s32 %s16, 1
      %s24 = ssub.s32 %s16, %s23
      %p25 = scmp.eq.s32.totalorder %s24, 0
      %s27 = sadd.s32 %s26, 1
      %s28 = scalar_select %p25, %s26, %s27
      %p31 = pneg %p25
      %p32 = scmp.eq.s32.totalorder %s16, 1
      %p33 = por %p31, %p32
      %p34 = scmp.ne.s32.totalorder %s26, %s29
      %p35 = scmp.eq.s32.totalorder %s16, 0
      %p36 = por %p34, %p35
      %p37 = scmp.ne.s32.totalorder %s26, %s29
      %p38 = scmp.eq.s32.totalorder %s21, 1
      %p39 = por %p37, %p38
      %p40 = scmp.ne.s32.totalorder %s29, %s30
      %p41 = scmp.eq.s32.totalorder %s21, 0
      %p42 = por %p40, %p41
      %p43 = scmp.ne.s32.totalorder %s29, %s30
      %p44 = scmp.eq.s32.totalorder %s22, 1
      %p45 = por %p43, %p44
      %p47 = scmp.ne.s32.totalorder %s30, %s46
      %p48 = scmp.eq.s32.totalorder %s22, 0
      %p49 = por %p47, %p48
      %s51 = sadd.s32 %s50, 1
      %p54 = scmp.eq.s32.totalorder %s16, 1
      %p55 = scmp.ne.s32.totalorder %s50, %s52
      %p56 = scmp.eq.s32.totalorder %s16, 0
      %p57 = por %p55, %p56
      %p58 = scmp.ne.s32.totalorder %s50, %s52
      %p59 = scmp.eq.s32.totalorder %s21, 1
      %p60 = por %p58, %p59
      %p61 = scmp.ne.s32.totalorder %s52, %s53
      %p62 = scmp.eq.s32.totalorder %s21, 0
      %p63 = por %p61, %p62
      %p64 = scmp.ne.s32.totalorder %s52, %s53
      %p65 = scmp.eq.s32.totalorder %s22, 1
      %p66 = por %p64, %p65
      %p68 = scmp.ne.s32.totalorder %s53, %s67
      %p69 = scmp.eq.s32.totalorder %s22, 0
      %p70 = por %p68, %p69
      %s72 = sadd.s32 %s71, 1
      %p75 = scmp.eq.s32.totalorder %s16, 1
      %p76 = scmp.ne.s32.totalorder %s71, %s73
      %p77 = scmp.eq.s32.totalorder %s16, 0
      %p78 = por %p76, %p77
      %p79 = scmp.ne.s32.totalorder %s71, %s73
      %p80 = scmp.eq.s32.totalorder %s21, 1
      %p81 = por %p79, %p80
      %p82 = scmp.ne.s32.totalorder %s73, %s74
      %p83 = scmp.eq.s32.totalorder %s21, 0
      %p84 = por %p82, %p83
      %p85 = scmp.ne.s32.totalorder %s73, %s74
      %p86 = scmp.eq.s32.totalorder %s22, 1
      %p87 = por %p85, %p86
      %p89 = scmp.ne.s32.totalorder %s74, %s88
      %p90 = scmp.eq.s32.totalorder %s22, 0
      %p91 = por %p89, %p90
      %s93 = sadd.s32 %s92, 1
      %p96 = scmp.eq.s32.totalorder %s16, 1
      %p97 = scmp.ne.s32.totalorder %s92, %s94
      %p98 = scmp.eq.s32.totalorder %s16, 0
      %p99 = por %p97, %p98
      %p100 = scmp.ne.s32.totalorder %s92, %s94
      %p101 = scmp.eq.s32.totalorder %s21, 1
      %p102 = por %p100, %p101
      %p103 = scmp.ne.s32.totalorder %s94, %s95
      %p104 = scmp.eq.s32.totalorder %s21, 0
      %p105 = por %p103, %p104
      %p106 = scmp.ne.s32.totalorder %s94, %s95
      %p107 = scmp.eq.s32.totalorder %s22, 1
      %p108 = por %p106, %p107
      %p110 = scmp.ne.s32.totalorder %s95, %s109
      %p111 = scmp.eq.s32.totalorder %s22, 0
      %p112 = por %p110, %p111
      %s114 = sadd.s32 %s113, 1
      %p117 = scmp.eq.s32.totalorder %s16, 1
      %p118 = scmp.ne.s32.totalorder %s113, %s115
      %p119 = scmp.eq.s32.totalorder %s16, 0
      %p120 = por %p118, %p119
      %p121 = scmp.ne.s32.totalorder %s113, %s115
      %p122 = scmp.eq.s32.totalorder %s21, 1
      %p123 = por %p121, %p122
      %p124 = scmp.ne.s32.totalorder %s115, %s116
      %p125 = scmp.eq.s32.totalorder %s21, 0
      %p126 = por %p124, %p125
      %p127 = scmp.ne.s32.totalorder %s115, %s116
      %p128 = scmp.eq.s32.totalorder %s22, 1
      %p129 = por %p127, %p128
      %p131 = scmp.ne.s32.totalorder %s116, %s130
      %p132 = scmp.eq.s32.totalorder %s22, 0
      %p133 = por %p131, %p132
      %s135 = sadd.s32 %s134, 1
      %p138 = scmp.eq.s32.totalorder %s16, 1
      %p139 = scmp.ne.s32.totalorder %s134, %s136
      %p140 = scmp.eq.s32.totalorder %s16, 0
      %p141 = por %p139, %p140
      %p142 = scmp.ne.s32.totalorder %s134, %s136
      %p143 = scmp.eq.s32.totalorder %s21, 1
      %p144 = por %p142, %p143
      %p145 = scmp.ne.s32.totalorder %s136, %s137
      %p146 = scmp.eq.s32.totalorder %s21, 0
      %p147 = por %p145, %p146
      %p148 = scmp.ne.s32.totalorder %s136, %s137
      %p149 = scmp.eq.s32.totalorder %s22, 1
      %p150 = por %p148, %p149
      %p152 = scmp.ne.s32.totalorder %s137, %s151
      %p153 = scmp.eq.s32.totalorder %s22, 0
      %p154 = por %p152, %p153
      %s156 = sadd.s32 %s155, 1
      %p159 = scmp.eq.s32.totalorder %s16, 1
      %p160 = scmp.ne.s32.totalorder %s155, %s157
      %p161 = scmp.eq.s32.totalorder %s16, 0
      %p162 = por %p160, %p161
      %p163 = scmp.ne.s32.totalorder %s155, %s157
      %p164 = scmp.eq.s32.totalorder %s21, 1
      %p165 = por %p163, %p164
      %p166 = scmp.ne.s32.totalorder %s157, %s158
      %p167 = scmp.eq.s32.totalorder %s21, 0
      %p168 = por %p166, %p167
      %p169 = scmp.ne.s32.totalorder %s157, %s158
      %p170 = scmp.eq.s32.totalorder %s22, 1
      %p171 = por %p169, %p170
      %p173 = scmp.ne.s32.totalorder %s158, %s172
      %p174 = scmp.eq.s32.totalorder %s22, 0
      %p175 = por %p173, %p174
      %s176 = ssub.s32 %s16, %s23
      %p177 = scmp.eq.s32.totalorder %s176, 0
      %s179 = sadd.s32 %s178, 1
      %s180 = scalar_select %p177, %s178, %s179
      %p183 = pneg %p177
      %p184 = scmp.eq.s32.totalorder %s16, 1
      %p185 = por %p183, %p184
      %p186 = scmp.ne.s32.totalorder %s178, %s181
      %p187 = scmp.eq.s32.totalorder %s16, 0
      %p188 = por %p186, %p187
      %p189 = scmp.ne.s32.totalorder %s178, %s181
      %p190 = scmp.eq.s32.totalorder %s21, 1
      %p191 = por %p189, %p190
      %p192 = scmp.ne.s32.totalorder %s181, %s182
      %p193 = scmp.eq.s32.totalorder %s21, 0
      %p194 = por %p192, %p193
      %p195 = scmp.ne.s32.totalorder %s181, %s182
      %p196 = scmp.eq.s32.totalorder %s22, 1
      %p197 = por %p195, %p196
      %p199 = scmp.ne.s32.totalorder %s182, %s198
      %p200 = scmp.eq.s32.totalorder %s22, 0
      %p201 = por %p199, %p200
      %p202 = scmp.le.s32.totalorder 1, %s16
      %p203 = scmp.lt.s32.totalorder %s16, 3
      %p204 = pnand %p202, %p203
      %p205 = pneg %p204
      // Predicated region
      $region9: #{tpu_custom_call.1} parent=5 // pred_check
        _
      $region10: #{tpu_custom_call.1} parent=5 // pred_check_branch
        %207 = sbr.rel (%p204) target = $region12
      $region11: #{tpu_custom_call.1} parent=5 // pred_region
        %s208 = ssub.s32 %s16, 1
        // Predicated region
        $region13: #{tpu_custom_call.1} parent=11 // pred_check
          %p209 = pneg %p63
        $region14: #{tpu_custom_call.1} parent=11 // pred_check_branch
          %211 = sbr.rel (%p209) target = $region16
        $region15: #{tpu_custom_call.1} parent=11 // pred_region
          _
        $region16: #{tpu_custom_call.1} parent=11 // pred_fallthru
          _
        // Predicated region
        $region17: #{tpu_custom_call.1} parent=11 // pred_check
          %p212 = pneg %p84
        $region18: #{tpu_custom_call.1} parent=11 // pred_check_branch
          %214 = sbr.rel (%p212) target = $region20
        $region19: #{tpu_custom_call.1} parent=11 // pred_region
          _
        $region20: #{tpu_custom_call.1} parent=11 // pred_fallthru
          _
        // Predicated region
        $region21: #{tpu_custom_call.1} parent=11 // pred_check
          %p215 = pneg %p105
        $region22: #{tpu_custom_call.1} parent=11 // pred_check_branch
          %217 = sbr.rel (%p215) target = $region24
        $region23: #{tpu_custom_call.1} parent=11 // pred_region
          _
        $region24: #{tpu_custom_call.1} parent=11 // pred_fallthru
          _
        // Predicated region
        $region25: #{tpu_custom_call.1} parent=11 // pred_check
          %p218 = pneg %p126
        $region26: #{tpu_custom_call.1} parent=11 // pred_check_branch
          %220 = sbr.rel (%p218) target = $region28
        $region27: #{tpu_custom_call.1} parent=11 // pred_region
          _
        $region28: #{tpu_custom_call.1} parent=11 // pred_fallthru
          _
        // Predicated region
        $region29: #{tpu_custom_call.1} parent=11 // pred_check
          %p221 = pneg %p147
        $region30: #{tpu_custom_call.1} parent=11 // pred_check_branch
          %223 = sbr.rel (%p221) target = $region32
        $region31: #{tpu_custom_call.1} parent=11 // pred_region
          _
        $region32: #{tpu_custom_call.1} parent=11 // pred_fallthru
          _
        // Predicated region
        $region33: #{tpu_custom_call.1} parent=11 // pred_check
          %p224 = pneg %p168
        $region34: #{tpu_custom_call.1} parent=11 // pred_check_branch
          %226 = sbr.rel (%p224) target = $region36
        $region35: #{tpu_custom_call.1} parent=11 // pred_region
          _
        $region36: #{tpu_custom_call.1} parent=11 // pred_fallthru
          _
      $region12: #{tpu_custom_call.1} parent=5 // pred_fallthru
        _
      %p227 = scmp.lt.s32.totalorder %s16, 2
      // Predicated region
      $region37: #{tpu_custom_call.1} parent=5 // pred_check
        %p228 = pneg %p227
      $region38: #{tpu_custom_call.1} parent=5 // pred_check_branch
        %230 = sbr.rel (%p228) target = $region40
      $region39: #{tpu_custom_call.1} parent=5 // pred_region
        // Predicated region
        $region41: #{tpu_custom_call.1} parent=39 // pred_check
          %p231 = pneg %p36
        $region42: #{tpu_custom_call.1} parent=39 // pred_check_branch
          %233 = sbr.rel (%p231) target = $region44
        $region43: #{tpu_custom_call.1} parent=39 // pred_region
          %p234 = scmp.lt.s32.totalorder %s16, 1
          %s235 = scalar_select %p234, %s16, 1
          %s236 = smul.addr %s235, 2
          %s237 = scalar_lea.vmem %s0, %s236
        $region44: #{tpu_custom_call.1} parent=39 // pred_fallthru
          _
      $region40: #{tpu_custom_call.1} parent=5 // pred_fallthru
        _
      %p238 = scmp.le.s32.totalorder 1, %s16
      %p239 = scmp.lt.s32.totalorder %s16, 3
      %p240 = pnand %p238, %p239
      %p241 = pneg %p240
      // Predicated region
      $region45: #{tpu_custom_call.1} parent=5 // pred_check
        _
      $region46: #{tpu_custom_call.1} parent=5 // pred_check_branch
        %243 = sbr.rel (%p240) target = $region48
      $region47: #{tpu_custom_call.1} parent=5 // pred_region
        %s244 = ssub.s32 %s16, 1
        %p245 = scmp.lt.s32.totalorder %s21, 1
        %s246 = scalar_select %p245, %s21, 1
        %s247 = smul.addr %s246, 2
        %s248 = scalar_lea.vmem %s0, %s247
        %p249 = pneg %p42
        %p250 = pneg %p39
        %p251 = pneg %p63
        %p252 = pneg %p60
        %p253 = pneg %p84
        %p254 = pneg %p81
        %p255 = pneg %p105
        %p256 = pneg %p102
        %p257 = pneg %p126
        %p258 = pneg %p123
        %p259 = pneg %p147
        %p260 = pneg %p144
        %p261 = pneg %p168
        %p262 = pneg %p165
        %p263 = pneg %p194
        %p264 = pneg %p191
        %s265 = sand.u32 %s181, 1
        %s266 = scalar_lea.sflag [#allocation3], %s265
        %s267 = sand.u32 %s181, 1
        %s268 = smul.addr %s267, 2
        %s269 = scalar_lea.vmem [#allocation2], %s268
        %p270 = scmp.lt.s32.totalorder %s21, 1
        %s271 = scalar_select %p270, %s21, 1
        %s272 = smul.addr %s271, 2
        %s273 = scalar_lea.vmem %s0, %s272
        %v275 = vld [vmem:[%s273] sm:$0x3]
        %v276 = vld [vmem:[%s1] sm:$0xff]
        %v277 = vld [vmem:[%s1 + $0x8] sm:$0xff]
        %v278 = vld [vmem:[%s1 + $0x10] sm:$0xff]
        %v279 = vld [vmem:[%s1 + $0x18] sm:$0xff]
        %v280 = vld [vmem:[%s1 + $0x20] sm:$0xff]
        %v281 = vld [vmem:[%s1 + $0x28] sm:$0xff]
        %v282 = vld [vmem:[%s1 + $0x30] sm:$0xff]
        %v283 = vld [vmem:[%s1 + $0x38] sm:$0xff]
        %v284 = vld [vmem:[%s2] sm:$0xff]
        %v285 = vld [vmem:[%s2 + $0x8] sm:$0xff]
        %v286 = vld [vmem:[%s2 + $0x10] sm:$0xff]
        %v287 = vld [vmem:[%s2 + $0x18] sm:$0xff]
        %v288 = vld [vmem:[%s2 + $0x20] sm:$0xff]
        %v289 = vld [vmem:[%s2 + $0x28] sm:$0xff]
        %v290 = vld [vmem:[%s2 + $0x30] sm:$0xff]
        %v291 = vld [vmem:[%s2 + $0x38] sm:$0xff]
        %293 = vset.pattern.permute.xlu0 0
        %294 = vperm.xlu0 %293, %v276
        %v295 = vpop.permute.xlu0 %294
        %298 = vset.pattern.permute.xlu0 0
        %299 = vperm.xlu0 %298, %v277
        %v300 = vpop.permute.xlu0 %299
        %303 = vset.pattern.permute.xlu0 0
        %304 = vperm.xlu0 %303, %v278
        %v305 = vpop.permute.xlu0 %304
        %308 = vset.pattern.permute.xlu0 0
        %309 = vperm.xlu0 %308, %v279
        %v310 = vpop.permute.xlu0 %309
        %313 = vset.pattern.permute.xlu0 0
        %314 = vperm.xlu0 %313, %v280
        %v315 = vpop.permute.xlu0 %314
        %318 = vset.pattern.permute.xlu0 0
        %319 = vperm.xlu0 %318, %v281
        %v320 = vpop.permute.xlu0 %319
        %323 = vset.pattern.permute.xlu0 0
        %324 = vperm.xlu0 %323, %v282
        %v325 = vpop.permute.xlu0 %324
        %328 = vset.pattern.permute.xlu0 0
        %329 = vperm.xlu0 %328, %v283
        %v330 = vpop.permute.xlu0 %329
        %v332 = vlaneseq
        %v333 = vshrl.u32 %v332, 7
        %v334 = vsub.s32 0, %v333
        %v335 = vrot.slane %v275, %v334
        %v336 = vmul.f32 %v295, %v335
        %v337 = vmul.f32 %v300, %v335
        %v338 = vmul.f32 %v305, %v335
        %v339 = vmul.f32 %v310, %v335
        %v340 = vmul.f32 %v315, %v335
        %v341 = vmul.f32 %v320, %v335
        %v342 = vmul.f32 %v325, %v335
        %v343 = vmul.f32 %v330, %v335
        %345 = vset.pattern.permute.xlu0 0
        %346 = vperm.xlu0 %345, %v284
        %v347 = vpop.permute.xlu0 %346
        %350 = vset.pattern.permute.xlu0 0
        %351 = vperm.xlu0 %350, %v285
        %v352 = vpop.permute.xlu0 %351
        %355 = vset.pattern.permute.xlu0 0
        %356 = vperm.xlu0 %355, %v286
        %v357 = vpop.permute.xlu0 %356
        %360 = vset.pattern.permute.xlu0 0
        %361 = vperm.xlu0 %360, %v287
        %v362 = vpop.permute.xlu0 %361
        %365 = vset.pattern.permute.xlu0 0
        %366 = vperm.xlu0 %365, %v288
        %v367 = vpop.permute.xlu0 %366
        %370 = vset.pattern.permute.xlu0 0
        %371 = vperm.xlu0 %370, %v289
        %v372 = vpop.permute.xlu0 %371
        %375 = vset.pattern.permute.xlu0 0
        %376 = vperm.xlu0 %375, %v290
        %v377 = vpop.permute.xlu0 %376
        %380 = vset.pattern.permute.xlu0 0
        %381 = vperm.xlu0 %380, %v291
        %v382 = vpop.permute.xlu0 %381
        %v384 = vadd.f32 %v347, %v336
        %v385 = vadd.f32 %v352, %v337
        %v386 = vadd.f32 %v357, %v338
        %v387 = vadd.f32 %v362, %v339
        %v388 = vadd.f32 %v367, %v340
        %v389 = vadd.f32 %v372, %v341
        %v390 = vadd.f32 %v377, %v342
        %v391 = vadd.f32 %v382, %v343
        %392 = vset.pattern.permute.xlu0 1
        %393 = vperm.xlu0 %392, %v276
        %v394 = vpop.permute.xlu0 %393
        %396 = vset.pattern.permute.xlu0 1
        %397 = vperm.xlu0 %396, %v277
        %v398 = vpop.permute.xlu0 %397
        %400 = vset.pattern.permute.xlu0 1
        %401 = vperm.xlu0 %400, %v278
        %v402 = vpop.permute.xlu0 %401
        %404 = vset.pattern.permute.xlu0 1
        %405 = vperm.xlu0 %404, %v279
        %v406 = vpop.permute.xlu0 %405
        %408 = vset.pattern.permute.xlu0 1
        %409 = vperm.xlu0 %408, %v280
        %v410 = vpop.permute.xlu0 %409
        %412 = vset.pattern.permute.xlu0 1
        %413 = vperm.xlu0 %412, %v281
        %v414 = vpop.permute.xlu0 %413
        %416 = vset.pattern.permute.xlu0 1
        %417 = vperm.xlu0 %416, %v282
        %v418 = vpop.permute.xlu0 %417
        %420 = vset.pattern.permute.xlu0 1
        %421 = vperm.xlu0 %420, %v283
        %v422 = vpop.permute.xlu0 %421
        %v424 = vlaneseq
        %v425 = vshrl.u32 %v424, 7
        %v426 = vsub.s32 1, %v425
        %v427 = vrot.slane %v275, %v426
        %v428 = vmul.f32 %v394, %v427
        %v429 = vmul.f32 %v398, %v427
        %v430 = vmul.f32 %v402, %v427
        %v431 = vmul.f32 %v406, %v427
        %v432 = vmul.f32 %v410, %v427
        %v433 = vmul.f32 %v414, %v427
        %v434 = vmul.f32 %v418, %v427
        %v435 = vmul.f32 %v422, %v427
        %v436 = vadd.f32 %v384, %v428
        %v437 = vadd.f32 %v385, %v429
        %v438 = vadd.f32 %v386, %v430
        %v439 = vadd.f32 %v387, %v431
        %v440 = vadd.f32 %v388, %v432
        %v441 = vadd.f32 %v389, %v433
        %v442 = vadd.f32 %v390, %v434
        %v443 = vadd.f32 %v391, %v435
        %v444 = vmax.f32 %v436, 0.0
        %v445 = vmax.f32 %v437, 0.0
        %v446 = vmax.f32 %v438, 0.0
        %v447 = vmax.f32 %v439, 0.0
        %v448 = vmax.f32 %v440, 0.0
        %v449 = vmax.f32 %v441, 0.0
        %v450 = vmax.f32 %v442, 0.0
        %v451 = vmax.f32 %v443, 0.0
        %v452 = vld [vmem:[%s3] sm:$0xf]
        %v453 = vld [vmem:[%s3 + $0x4] sm:$0xf]
        %v454 = vld [vmem:[%s3 + $0x8] sm:$0xf]
        %v455 = vld [vmem:[%s3 + $0xc] sm:$0xf]
        %v456 = vpack.c.bf16 %v445, %v444
        %v457 = vpack.c.bf16 %v447, %v446
        %v458 = vpack.c.bf16 %v449, %v448
        %v459 = vpack.c.bf16 %v451, %v450
        %v460 = vld [vmem:[%s4] sm:$0xff]
        %v461 = vld [vmem:[%s4 + $0x8] sm:$0xff]
        %v462 = vld [vmem:[%s4 + $0x10] sm:$0xff]
        %v463 = vld [vmem:[%s4 + $0x18] sm:$0xff]
        %465 = vset.pattern.permute.xlu0 0
        %466 = vperm.xlu0 %465, %v460
        %v467 = vpop.permute.xlu0 %466
        %470 = vset.pattern.permute.xlu0 0
        %471 = vperm.xlu0 %470, %v461
        %v472 = vpop.permute.xlu0 %471
        %475 = vset.pattern.permute.xlu0 0
        %476 = vperm.xlu0 %475, %v462
        %v477 = vpop.permute.xlu0 %476
        %480 = vset.pattern.permute.xlu0 0
        %481 = vperm.xlu0 %480, %v463
        %v482 = vpop.permute.xlu0 %481
        %v488 = vunpack.c.l.b16 %v452
        %v489 = vunpack.c.l.b16 %v453
        %v490 = vunpack.c.l.b16 %v454
        %v491 = vunpack.c.l.b16 %v455
        %v492 = vpack.c.b16 %v489, %v488
        %v493 = vpack.c.b16 %v491, %v490
        %vm494 = vcmask 523264
        %v496 = vsel %vm494, %v492, 0
        %v499 = vsel %vm494, %v493, 0
        %501 = vmatprep.subr.bf16.mxu0 0
        %502 = vmatpush1.bf16.msra.mxu0 0
        %503 = vmatprep.subr.bf16.mxu0 0
        %504 = vmatpush1.bf16.msra.mxu0 0
        %505 = vmatprep.subr.bf16.mxu0 0
        %506 = vmatpush1.bf16.msra.mxu0 0
        %507 = vmatprep.subr.bf16.mxu0 0
        %508 = vmatpush1.bf16.msra.mxu0 0
        %509 = vmatprep.subr.bf16.mxu0 0
        %510 = vmatpush1.bf16.msra.mxu0 %v459
        %511 = vmatprep.subr.bf16.mxu0 0
        %512 = vmatpush1.bf16.msra.mxu0 %v458
        %513 = vmatprep.subr.bf16.mxu0 0
        %514 = vmatpush1.bf16.msra.mxu0 %v457
        %515 = vmatprep.subr.bf16.mxu0 0
        %516 = vmatpush1.bf16.msra.mxu0 %v456
        %517 = vmatprep.subr.bf16.mxu0 0
        %518 = vmatpush2.bf16.msra.mxu0 0
        %519 = vmatprep.subr.bf16.mxu0 0
        %520 = vmatpush2.bf16.msra.mxu0 0
        %521 = vmatprep.subr.bf16.mxu0 0
        %522 = vmatpush2.bf16.msra.mxu0 0
        %523 = vmatprep.subr.bf16.mxu0 0
        %524 = vmatpush2.bf16.msra.mxu0 0
        %525 = vmatprep.subr.bf16.mxu0 0
        %526 = vmatpush2.bf16.msra.mxu0 0
        %527 = vmatprep.subr.bf16.mxu0 0
        %528 = vmatpush2.bf16.msra.mxu0 0
        %529 = vmatprep.subr.bf16.mxu0 0
        %530 = vmatpush2.bf16.msra.mxu0 0
        %531 = vmatprep.subr.bf16.mxu0 0
        %532 = vmatpush2.bf16.msra.mxu0 0
        %533 = vmatprep.mubr.bf16.mxu0 0
        %534 = vmatmul.mubr.bf16.gmra.mxu0 %v496
        %v535 = vpop.f32.mrf.mxu0
        %v536 = vadd.f32 %v467, %v535
        %v537 = vpop.f32.mrf.mxu0
        %v538 = vpop.f32.mrf.mxu0
        %v539 = vadd.f32 %v472, %v538
        %v540 = vpop.f32.mrf.mxu0
        %541 = vmatprep.mubr.bf16.mxu0 0
        %542 = vmatmul.mubr.bf16.gmra.mxu0 %v499
        %v543 = vpop.f32.mrf.mxu0
        %v544 = vadd.f32 %v477, %v543
        %v545 = vpop.f32.mrf.mxu0
        %v546 = vpop.f32.mrf.mxu0
        %v547 = vadd.f32 %v482, %v546
        %v548 = vpop.f32.mrf.mxu0
        %549 = vdwg.mxu0
        %v550 = vmax.f32 %v536, 0.0
        %v551 = vmax.f32 %v539, 0.0
        %v552 = vmax.f32 %v544, 0.0
        %v553 = vmax.f32 %v547, 0.0
        %v554 = vld [vmem:[%s5] sm:$0x1]
        %v555 = vpack.c.bf16 %v551, %v550
        %v556 = vpack.c.bf16 %v553, %v552
        %v557 = vld [vmem:[%s6] sm:$0x3]
        %559 = vset.pattern.permute.xlu0 0
        %560 = vperm.xlu0 %559, %v557
        %v561 = vpop.permute.xlu0 %560
        %vm563 = vcmask 261120
        %v565 = vsel %vm563, %v554, 0
        %567 = vmatprep.subr.bf16.mxu0 0
        %568 = vmatpush1.bf16.msra.mxu0 0
        %569 = vmatprep.subr.bf16.mxu0 0
        %570 = vmatpush1.bf16.msra.mxu0 0
        %571 = vmatprep.subr.bf16.mxu0 0
        %572 = vmatpush1.bf16.msra.mxu0 0
        %573 = vmatprep.subr.bf16.mxu0 0
        %574 = vmatpush1.bf16.msra.mxu0 0
        %575 = vmatprep.subr.bf16.mxu0 0
        %576 = vmatpush1.bf16.msra.mxu0 0
        %577 = vmatprep.subr.bf16.mxu0 0
        %578 = vmatpush1.bf16.msra.mxu0 0
        %579 = vmatprep.subr.bf16.mxu0 0
        %580 = vmatpush1.bf16.msra.mxu0 %v556
        %581 = vmatprep.subr.bf16.mxu0 0
        %582 = vmatpush1.bf16.msra.mxu0 %v555
        %583 = vmatprep.subr.bf16.mxu0 0
        %584 = vmatpush2.bf16.msra.mxu0 0
        %585 = vmatprep.subr.bf16.mxu0 0
        %586 = vmatpush2.bf16.msra.mxu0 0
        %587 = vmatprep.subr.bf16.mxu0 0
        %588 = vmatpush2.bf16.msra.mxu0 0
        %589 = vmatprep.subr.bf16.mxu0 0
        %590 = vmatpush2.bf16.msra.mxu0 0
        %591 = vmatprep.subr.bf16.mxu0 0
        %592 = vmatpush2.bf16.msra.mxu0 0
        %593 = vmatprep.subr.bf16.mxu0 0
        %594 = vmatpush2.bf16.msra.mxu0 0
        %595 = vmatprep.subr.bf16.mxu0 0
        %596 = vmatpush2.bf16.msra.mxu0 0
        %597 = vmatprep.subr.bf16.mxu0 0
        %598 = vmatpush2.bf16.msra.mxu0 0
        %599 = vmatprep.mubr.bf16.mxu0 0
        %600 = vmatmul.mubr.bf16.gmra.mxu0 %v565
        %v601 = vpop.f32.mrf.mxu0
        %v602 = vadd.f32 %v561, %v601
        %v603 = vpop.f32.mrf.mxu0
        %v604 = vpop.f32.mrf.mxu0
        %v605 = vpop.f32.mrf.mxu0
        %606 = vdwg.mxu0
        %607 = vst [vmem:[%s269] sm:$0x3] %v602
        %s608 = sand.u32 %s181, 1
        %s609 = scalar_lea.sflag [#allocation3], %s608
        %s610 = sand.u32 %s181, 1
        %s611 = smul.addr %s610, 2
        %s612 = scalar_lea.vmem [#allocation2], %s611
        // Predicated region
        $region49: #{tpu_custom_call.1} parent=47 // pred_check
          %p613 = pneg %p191
        $region50: #{tpu_custom_call.1} parent=47 // pred_check_branch
          %615 = sbr.rel (%p613) target = $region52
        $region51: #{tpu_custom_call.1} parent=47 // pred_region
          %s617 = ssub.s32 32, 32
          %618 = vsyncadd %s609, %s617
          %s619 = smul.addr %s21, 32
          %s620 = scalar_lea.hbm %s7, %s619
          %s622 = sshll.u32 %s612, 4
          %s623 = int_to_ptr.vmem [resolvable:$true] %s622
          %625 = dma.vmem_to_hbm [thread:$0]  %s623, 32, %s620, %s609
        $region52: #{tpu_custom_call.1} parent=47 // pred_fallthru
          _
      $region48: #{tpu_custom_call.1} parent=5 // pred_fallthru
        _
      %p626 = scmp.le.s32.totalorder 2, %s16
      // Predicated region
      $region53: #{tpu_custom_call.1} parent=5 // pred_check
        %p627 = pneg %p626
      $region54: #{tpu_custom_call.1} parent=5 // pred_check_branch
        %629 = sbr.rel (%p627) target = $region56
      $region55: #{tpu_custom_call.1} parent=5 // pred_region
        %s630 = ssub.s32 %s16, 2
        // Predicated region
        $region57: #{tpu_custom_call.1} parent=55 // pred_check
          %p631 = pneg %p197
        $region58: #{tpu_custom_call.1} parent=55 // pred_check_branch
          %633 = sbr.rel (%p631) target = $region60
        $region59: #{tpu_custom_call.1} parent=55 // pred_region
          %s634 = sand.u32 %s182, 1
          %s635 = scalar_lea.sflag [#allocation3], %s634
          %s636 = sand.u32 %s182, 1
          %s637 = smul.addr %s636, 2
          %s638 = scalar_lea.vmem [#allocation2], %s637
          %639 = dma.done %s635, 32
        $region60: #{tpu_custom_call.1} parent=55 // pred_fallthru
          _
      $region56: #{tpu_custom_call.1} parent=5 // pred_fallthru
        _
    $region6: #{tpu_custom_call.1} parent=1 // loop_footer
      %s20 = sadd.s32 1, %s16
    $region7: #{tpu_custom_call.1} parent=1 // loop_footer_branch
      %15 = sbr.rel target = $region3
    $region8: #{tpu_custom_call.1} parent=1 // loop_exit
      _
    %640 = vsyncpa [#allocation3], 1
    %s641 = scalar_lea.sflag [#allocation3], 1
    %642 = vsyncpa %s641, 1

</llo_original>
